<compile_context>
chip_gen: v6e
topology: v6e:2x2x1
jax: 0.10.0
libtpu: 0.0.40
codegen_flags: <defaults>
</compile_context>

<pallas_src>
import functools

import jax
import jax.numpy as jnp
from jax.experimental import pallas as pl
from jax.experimental.pallas import tpu as pltpu


def _varpool_kernel(x_ref, p_ref, o_ref, *, pool_size: int, use_log: bool):
    # x_ref: (TR, TT) rows (any float dtype)
    # p_ref: (TT, TT // pool) bf16 0/1 block-diagonal pooling matrix
    # o_ref: (TR, TT // pool) f32 (log-)variance
    x = x_ref[...].astype(jnp.float32)  # in-kernel cast: bf16 streams directly
    p = p_ref[...]                      # bf16, exactly 0/1

    # Variance is shift invariant: remove the per-row mean so the one-pass
    # (sum, sum-of-squares) formula is robust to DC offsets (no catastrophic
    # cancellation).  Costs one XLU lane-reduce + one VPU subtract.
    xc = x - jnp.mean(x, axis=-1, keepdims=True)
    x2 = xc * xc

    # Windowed sums on the MXU at DEFAULT precision.  P needs no splitting
    # (exact in bf16); the f32 LHS is split into bf16 hi/lo parts, giving
    # 2 single-pass bf16 matmuls per moment (4 passes/tile total) with
    # ~1e-5 relative accuracy thanks to f32 accumulation.
    def _windowed_sum(v):
        hi = v.astype(jnp.bfloat16)
        lo = (v - hi.astype(jnp.float32)).astype(jnp.bfloat16)
        return (jnp.dot(hi, p, preferred_element_type=jnp.float32)
                + jnp.dot(lo, p, preferred_element_type=jnp.float32))

    s = _windowed_sum(xc)
    ss = _windowed_sum(x2)

    inv_n = jnp.float32(1.0 / pool_size)
    inv_nm1 = jnp.float32(1.0 / (pool_size - 1))
    var = (ss - s * s * inv_n) * inv_nm1      # unbiased, matches torch.var default
    var = jnp.maximum(var, 0.0)               # guard tiny negatives from cancellation
    if use_log:
        var = jnp.log(jnp.clip(var, 1e-6, 1e6))
    o_ref[...] = var.astype(o_ref.dtype)


def _round_up(x: int, m: int) -> int:
    return ((x + m - 1) // m) * m


def _choose_tiles(R: int, T: int, pool_size: int, itemsize: int, max_t_tile):
    """Pick (tr, tt): row tile and pool/lane-aligned T tile."""
    sub_mult = max(8, 32 // itemsize)        # sublane multiple: 8 f32 / 16 bf16 / 32 int8
    payload = 2 << 20                        # ~2 MiB of input payload per block
    t_unit = pool_size * 128                 # T quantum: pool-aligned AND keeps the
                                             # output tile's lane dim a multiple of 128

    # ---- T tile --------------------------------------------------------------
    tt = T
    can_tile_t = (T % t_unit == 0) and (T // t_unit >= 2)
    p_bytes_full = T * (T // pool_size) * 2  # bf16 pooling-matrix footprint
    need_t_tile = (sub_mult * T * itemsize > payload) or (p_bytes_full > (2 << 20))
    if max_t_tile is not None:
        need_t_tile = need_t_tile or (max_t_tile < T)
    if can_tile_t and need_t_tile:
        units_total = T // t_unit
        budget_units = payload // (sub_mult * t_unit * itemsize)
        if max_t_tile is not None:
            budget_units = min(budget_units, max_t_tile // t_unit)
        budget_units = max(1, min(budget_units, units_total))
        # Largest divisor of units_total within budget -> no ragged T tiles
        # (keeps the in-kernel row mean free of padded-garbage columns).
        d = 1
        for cand in range(1, budget_units + 1):
            if units_total % cand == 0:
                d = cand
        tt = d * t_unit
    # (If T is huge and not t_unit-aligned we fall back to tt = T with the
    #  minimal row tile; fine for realistic EEG lengths.)

    # ---- R tile --------------------------------------------------------------
    row_bytes = tt * itemsize
    tr = max(sub_mult, (payload // max(1, row_bytes)) // sub_mult * sub_mult)
    if tr >= R:
        tr = R                               # block dim == full dim is always legal
    n_t = T // tt
    # Keep >=2 grid steps when possible: enables megacore sharding on v7x and
    # DMA/compute overlap even for a single big call.
    if n_t * (-(-R // tr)) < 2 and R >= 2 * sub_mult:
        tr = _round_up(-(-R // 2), sub_mult)
    return tr, tt


def var_pool(x, pool_size: int, var_type: str = "LogVarLayer", *, max_t_tile=None):
    """x: (N, F, 1, T) float32/bf16 -> (N, F, 1, T // pool_size) float32."""
    N, F, one, T = x.shape
    assert one == 1, "VarPool expects x of shape (n_batch, n_filter, 1, samples)"
    pool_size = int(pool_size)
    assert pool_size >= 2, "pool_size must be >= 2 (unbiased variance divides by pool_size - 1)"
    assert T % pool_size == 0, f"samples ({T}) must be divisible by pool_size ({pool_size})"
    n_pool = T // pool_size
    R = N * F
    use_log = (var_type == "LogVarLayer")
    itemsize = jnp.dtype(x.dtype).itemsize

    # Contiguous reshape only (no dtype cast -> no extra HBM pass).
    xr = x.reshape(R, T)

    tr, tt = _choose_tiles(R, T, pool_size, itemsize, max_t_tile)
    n_pool_t = tt // pool_size
    grid_r = pl.cdiv(R, tr)
    grid_t = T // tt
    grid = (grid_r, grid_t)

    # Per-T-tile 0/1 pooling matrix (identical for every T tile), bf16 = lossless.
    pool_mat = jnp.repeat(jnp.eye(n_pool_t, dtype=jnp.bfloat16), pool_size, axis=0)  # (tt, n_pool_t)

    kernel = functools.partial(_varpool_kernel, pool_size=pool_size, use_log=use_log)

    cost = pl.CostEstimate(
        flops=2 * 4 * R * T * n_pool + 10 * R * T,          # 4 bf16 MXU passes + elementwise
        transcendentals=(R * n_pool) if use_log else 0,
        bytes_accessed=R * T * itemsize + R * n_pool * 4 + tt * n_pool_t * 2,
    )

    out = pl.pallas_call(
        kernel,
        out_shape=jax.ShapeDtypeStruct((R, n_pool), jnp.float32),
        grid=grid,
        in_specs=[
            pl.BlockSpec((tr, tt), lambda i, t: (i, t)),          # lane-dense input rows
            pl.BlockSpec((tt, n_pool_t), lambda i, t: (0, 0)),    # pooling matrix, resident
        ],
        out_specs=pl.BlockSpec((tr, n_pool_t), lambda i, t: (i, t)),
        compiler_params=pltpu.CompilerParams(
            dimension_semantics=("parallel", "parallel"),  # disjoint output blocks
            vmem_limit_bytes=48 * 1024 * 1024,             # fits v5e/v6e/v7x comfortably
        ),
        cost_estimate=cost,
    )(xr, pool_mat)

    return out.reshape(N, F, 1, n_pool)


def _reference_var_pool(x, pool_size: int, var_type: str = "LogVarLayer"):
    """Pure-JAX reference mirroring the PyTorch forward."""
    N, F, _, T = x.shape
    n_pool = T // pool_size
    xr = x.astype(jnp.float32).reshape(N, F, n_pool, pool_size)
    var = jnp.var(xr, axis=3, keepdims=True, ddof=1)  # unbiased, like torch.var
    if var_type == "LogVarLayer":
        var = jnp.log(jnp.clip(var, 1e-6, 1e6))
    return var.reshape(N, F, 1, n_pool)


if __name__ == "__main__":
    key = jax.random.PRNGKey(0)
    k1, k2, k3 = jax.random.split(key, 3)

    # 1) Base shapes from the module: (n_batch, n_filter, 1, samples).
    N, F, T, POOL = 2, 4, 128, 16
    x = jax.random.normal(k1, (N, F, 1, T), dtype=jnp.float32)

    out = jax.block_until_ready(var_pool(x, POOL, "LogVarLayer"))
    ref = _reference_var_pool(x, POOL, "LogVarLayer")
    assert out.shape == (N, F, 1, T // POOL), out.shape
    assert jnp.allclose(out, ref, atol=1e-4, rtol=1e-4), "LogVarLayer mismatch vs reference"

    out_v = jax.block_until_ready(var_pool(x, POOL, "VarLayer"))
    ref_v = _reference_var_pool(x, POOL, "VarLayer")
    assert jnp.allclose(out_v, ref_v, atol=1e-4, rtol=1e-4), "VarLayer mismatch vs reference"

    # 2) bf16 input streams directly (f32 cast happens in-kernel).
    xb = x.astype(jnp.bfloat16)
    out_b = jax.block_until_ready(var_pool(xb, POOL, "LogVarLayer"))
    ref_b = _reference_var_pool(xb, POOL, "LogVarLayer")
    assert jnp.allclose(out_b, ref_b, atol=1e-4, rtol=1e-4), "bf16 LogVarLayer mismatch"

    # 3) Multi-row-tile grid (>=2 steps, ragged last R block) + DC offset
    #    exercising the in-kernel mean-centering robustness path.
    N2, F2, T2, POOL2 = 4, 9, 256, 16
    x2 = jax.random.normal(k2, (N2, F2, 1, T2), dtype=jnp.float32) + 50.0
    out2 = jax.block_until_ready(var_pool(x2, POOL2, "LogVarLayer"))
    ref2 = _reference_var_pool(x2, POOL2, "LogVarLayer")
    assert jnp.allclose(out2, ref2, atol=1e-3, rtol=1e-3), "offset/ragged-R mismatch"

    # 4) Pool-aligned T-tiling path (forced small T tile for coverage).
    N3, F3, T3, POOL3 = 2, 4, 1024, 4
    x3 = jax.random.normal(k3, (N3, F3, 1, T3), dtype=jnp.float32)
    out3 = jax.block_until_ready(var_pool(x3, POOL3, "VarLayer", max_t_tile=512))
    ref3 = _reference_var_pool(x3, POOL3, "VarLayer")
    assert jnp.allclose(out3, ref3, atol=1e-4, rtol=1e-4), "T-tiled VarLayer mismatch"

    print("KERNEL_OK")
</pallas_src>

<mosaic_0001>
module attributes {stable_mosaic.version = 11 : i64} {
  func.func @_varpool_kernel(%arg0: i32, %arg1: i32, %arg2: memref<8x128xf32, #tpu.memory_space<vmem>>, %arg3: memref<128x8xbf16, #tpu.memory_space<vmem>>, %arg4: memref<8x8xf32, #tpu.memory_space<vmem>>) attributes {dimension_semantics = [#tpu.dimension_semantics<parallel>, #tpu.dimension_semantics<parallel>], iteration_bounds = array<i64: 1, 1>, scalar_prefetch = 0 : i64, scratch_operands = 0 : i64, tpu.core_type = #tpu.core_type<tc>, window_params = [{transform_indices = @transform_0, window_bounds = array<i64: 8, 128>}, {pipeline_mode = #tpu.pipeline_mode<synchronous>, transform_indices = @transform_1, window_bounds = array<i64: 128, 8>}, {transform_indices = @transform_2, window_bounds = array<i64: 8, 8>}]} {
    %c0 = arith.constant 0 : index
    %c0_0 = arith.constant 0 : index
    %0 = vector.load %arg2[%c0, %c0_0] : memref<8x128xf32, #tpu.memory_space<vmem>>, vector<8x128xf32>
    %c0_1 = arith.constant 0 : index
    %c0_2 = arith.constant 0 : index
    %1 = vector.load %arg3[%c0_1, %c0_2] : memref<128x8xbf16, #tpu.memory_space<vmem>>, vector<128x8xbf16>
    %cst = arith.constant dense<0.000000e+00> : vector<8xf32>
    %2 = vector.multi_reduction <add>, %0, %cst [1] : vector<8x128xf32> to vector<8xf32>
    %3 = vector.shape_cast %2 : vector<8xf32> to vector<8x1xf32>
    %cst_3 = arith.constant 1.280000e+02 : f32
    %4 = vector.broadcast %cst_3 : f32 to vector<8x1xf32>
    %5 = arith.divf %3, %4 : vector<8x1xf32>
    %6 = vector.broadcast %5 : vector<8x1xf32> to vector<8x128xf32>
    %7 = arith.subf %0, %6 : vector<8x128xf32>
    %8 = arith.mulf %7, %7 : vector<8x128xf32>
    %9 = arith.truncf %7 : vector<8x128xf32> to vector<8x128xbf16>
    %10 = arith.extf %9 : vector<8x128xbf16> to vector<8x128xf32>
    %11 = arith.subf %7, %10 : vector<8x128xf32>
    %12 = arith.truncf %11 : vector<8x128xf32> to vector<8x128xbf16>
    %cst_4 = arith.constant dense<0.000000e+00> : vector<8x8xf32>
    %13 = tpu.matmul %9, %1, %cst_4 {dimension_numbers = #tpu.dot_dimension_numbers<[1], [0], [0], [1], [0, 0, 1, 1], [], []>} : vector<8x128xbf16>, vector<128x8xbf16>, vector<8x8xf32> -> vector<8x8xf32>
    %cst_5 = arith.constant dense<0.000000e+00> : vector<8x8xf32>
    %14 = tpu.matmul %12, %1, %cst_5 {dimension_numbers = #tpu.dot_dimension_numbers<[1], [0], [0], [1], [0, 0, 1, 1], [], []>} : vector<8x128xbf16>, vector<128x8xbf16>, vector<8x8xf32> -> vector<8x8xf32>
    %15 = arith.addf %13, %14 : vector<8x8xf32>
    %16 = arith.truncf %8 : vector<8x128xf32> to vector<8x128xbf16>
    %17 = arith.extf %16 : vector<8x128xbf16> to vector<8x128xf32>
    %18 = arith.subf %8, %17 : vector<8x128xf32>
    %19 = arith.truncf %18 : vector<8x128xf32> to vector<8x128xbf16>
    %cst_6 = arith.constant dense<0.000000e+00> : vector<8x8xf32>
    %20 = tpu.matmul %16, %1, %cst_6 {dimension_numbers = #tpu.dot_dimension_numbers<[1], [0], [0], [1], [0, 0, 1, 1], [], []>} : vector<8x128xbf16>, vector<128x8xbf16>, vector<8x8xf32> -> vector<8x8xf32>
    %cst_7 = arith.constant dense<0.000000e+00> : vector<8x8xf32>
    %21 = tpu.matmul %19, %1, %cst_7 {dimension_numbers = #tpu.dot_dimension_numbers<[1], [0], [0], [1], [0, 0, 1, 1], [], []>} : vector<8x128xbf16>, vector<128x8xbf16>, vector<8x8xf32> -> vector<8x8xf32>
    %22 = arith.addf %20, %21 : vector<8x8xf32>
    %23 = arith.mulf %15, %15 : vector<8x8xf32>
    %cst_8 = arith.constant 6.250000e-02 : f32
    %24 = vector.broadcast %cst_8 : f32 to vector<8x8xf32>
    %25 = arith.mulf %23, %24 : vector<8x8xf32>
    %26 = arith.subf %22, %25 : vector<8x8xf32>
    %cst_9 = arith.constant 0.0666666701 : f32
    %27 = vector.broadcast %cst_9 : f32 to vector<8x8xf32>
    %28 = arith.mulf %26, %27 : vector<8x8xf32>
    %cst_10 = arith.constant 0.000000e+00 : f32
    %29 = vector.broadcast %cst_10 : f32 to vector<8x8xf32>
    %30 = arith.maximumf %28, %29 : vector<8x8xf32>
    %cst_11 = arith.constant 9.99999997E-7 : f32
    %cst_12 = arith.constant 1.000000e+06 : f32
    %31 = vector.broadcast %cst_11 : f32 to vector<8x8xf32>
    %32 = arith.maximumf %31, %30 : vector<8x8xf32>
    %33 = vector.broadcast %cst_12 : f32 to vector<8x8xf32>
    %34 = arith.minimumf %33, %32 : vector<8x8xf32>
    %35 = math.log %34 : vector<8x8xf32>
    %c0_13 = arith.constant 0 : index
    %c0_14 = arith.constant 0 : index
    %36 = vector.load %arg4[%c0_13, %c0_14] : memref<8x8xf32, #tpu.memory_space<vmem>>, vector<8x8xf32>
    tpu.vector_store %arg4[%c0_13, %c0_14], %35 {strides = array<i32>} : memref<8x8xf32, #tpu.memory_space<vmem>>, vector<8x8xf32>,
    return
  }
  func.func @transform_0(%arg0: i32, %arg1: i32) -> (i32, i32) {
    %c0_i32 = arith.constant 0 : i32
    return %arg0, %arg1 : i32, i32
  }
  func.func @transform_1(%arg0: i32, %arg1: i32) -> (i32, i32) {
    %c0_i32 = arith.constant 0 : i32
    %c0_i32_0 = arith.constant 0 : i32
    %c0_i32_1 = arith.constant 0 : i32
    return %c0_i32, %c0_i32_0 : i32, i32
  }
  func.func @transform_2(%arg0: i32, %arg1: i32) -> (i32, i32) {
    %c0_i32 = arith.constant 0 : i32
    return %arg0, %arg1 : i32, i32
  }
}

</mosaic_0001>

<llo_original>
// kernel: tpu_custom_call.1
$region0: #{tpu_custom_call.1}
  #allocation0 [shape = 'u32[]', space=smem, size = 0x4, offset = 0x4, fixed_abs, tag = 'smem constant byte address 0x4 - core index']
  #allocation1 [shape = 'u32[144,128]{1,0:T(1,128)}', space=vmem, size = 0x12000, scoped, tag = 'internal scratch']
  %s0 = inlined_call_operand.vmem [shape: f32[8,128], index: 0, kind: input, shape index: {}]
  %s1 = inlined_call_operand.vmem [shape: bf16[128,8], index: 1, kind: input, shape index: {}]
  %s2 = inlined_call_operand.hbm [shape: f32[8,8], index: 2, kind: output, shape index: {}]
  %s3 = sld [smem:[#allocation0]]
  $region18: #{tpu_custom_call.1} parent=0
    _
  %s5 = ssub.s32 1, %s3
  %s6 = scalar_select 0, %s5, %s3
  $region1: #{tpu_custom_call.1} parent=0
    #allocation2 [shape = 'u8[4096]{0}', space=vmem, size = 0x1000, scoped, tag = 'output window, operand 0, single buffered']
    #allocation3 [shape = 's32[1]{0}', space=sflag, size = 0x4, scoped, tag = 'scoped memory for tpu_custom_call.1']
    %7 = vsyncpa [#allocation3], 0
    // Predicated region
    $region2: #{tpu_custom_call.1} parent=1 // pred_check
      _
    $region3: #{tpu_custom_call.1} parent=1 // pred_check_branch
      %9 = sbr.rel (0) target = $region5
    $region4: #{tpu_custom_call.1} parent=1 // pred_region
      _
    $region5: #{tpu_custom_call.1} parent=1 // pred_fallthru
      _
    // Predicated region
    $region6: #{tpu_custom_call.1} parent=1 // pred_check
      _
    $region7: #{tpu_custom_call.1} parent=1 // pred_check_branch
      %11 = sbr.rel (0) target = $region9
    $region8: #{tpu_custom_call.1} parent=1 // pred_region
      _
    $region9: #{tpu_custom_call.1} parent=1 // pred_fallthru
      _
    %v13 = vld [vmem:[%s0] sm:$0xff]
    %v14 = vld [vmem:[%s1] sm:$0xf]
    %v15 = vld [vmem:[%s1 + $0x4] sm:$0xf]
    %v16 = vld [vmem:[%s1 + $0x8] sm:$0xf]
    %v17 = vld [vmem:[%s1 + $0xc] sm:$0xf]
    %v18 = vld [vmem:[%s1 + $0x10] sm:$0xf]
    %v19 = vld [vmem:[%s1 + $0x14] sm:$0xf]
    %v20 = vld [vmem:[%s1 + $0x18] sm:$0xf]
    %v21 = vld [vmem:[%s1 + $0x1c] sm:$0xf]
    %v22 = vld [vmem:[%s1 + $0x20] sm:$0xf]
    %v23 = vld [vmem:[%s1 + $0x24] sm:$0xf]
    %v24 = vld [vmem:[%s1 + $0x28] sm:$0xf]
    %v25 = vld [vmem:[%s1 + $0x2c] sm:$0xf]
    %v26 = vld [vmem:[%s1 + $0x30] sm:$0xf]
    %v27 = vld [vmem:[%s1 + $0x34] sm:$0xf]
    %v28 = vld [vmem:[%s1 + $0x38] sm:$0xf]
    %v29 = vld [vmem:[%s1 + $0x3c] sm:$0xf]
    %30 = vadd.xlane.f32.xlu0 %v13
    %v31 = vpop.xlane.xlu0 %30
    %v32 = vrcp.pop 128.0
    %v33 = vmul.f32 %v31, %v32
    %v34 = vsub.f32 %v13, %v33
    %v35 = vmul.f32 %v34, %v34
    %v36 = vpack.c.bf16 %v34, %v34
    %v37 = vunpack.c.l.bf16 %v36
    %v38 = vsub.f32 %v34, %v37
    %v39 = vpack.c.bf16 %v38, %v38
    %v56 = vunpack.c.l.b16 %v14
    %v57 = vunpack.c.l.b16 %v15
    %v58 = vunpack.c.l.b16 %v16
    %v59 = vunpack.c.l.b16 %v17
    %v60 = vunpack.c.l.b16 %v18
    %v61 = vunpack.c.l.b16 %v19
    %v62 = vunpack.c.l.b16 %v20
    %v63 = vunpack.c.l.b16 %v21
    %v64 = vunpack.c.l.b16 %v22
    %v65 = vunpack.c.l.b16 %v23
    %v66 = vunpack.c.l.b16 %v24
    %v67 = vunpack.c.l.b16 %v25
    %v68 = vunpack.c.l.b16 %v26
    %v69 = vunpack.c.l.b16 %v27
    %v70 = vunpack.c.l.b16 %v28
    %v71 = vunpack.c.l.b16 %v29
    %v72 = vpack.c.b16 %v57, %v56
    %v73 = vpack.c.b16 %v59, %v58
    %v74 = vpack.c.b16 %v61, %v60
    %v75 = vpack.c.b16 %v63, %v62
    %v76 = vpack.c.b16 %v65, %v64
    %v77 = vpack.c.b16 %v67, %v66
    %v78 = vpack.c.b16 %v69, %v68
    %v79 = vpack.c.b16 %v71, %v70
    %88 = vmatprep.subr.bf16.mxu0 0
    %89 = vmatpush1.bf16.msra.mxu0 %v79
    %90 = vmatprep.subr.bf16.mxu0 0
    %91 = vmatpush1.bf16.msra.mxu0 %v78
    %92 = vmatprep.subr.bf16.mxu0 0
    %93 = vmatpush1.bf16.msra.mxu0 %v77
    %94 = vmatprep.subr.bf16.mxu0 0
    %95 = vmatpush1.bf16.msra.mxu0 %v76
    %96 = vmatprep.subr.bf16.mxu0 0
    %97 = vmatpush1.bf16.msra.mxu0 %v75
    %98 = vmatprep.subr.bf16.mxu0 0
    %99 = vmatpush1.bf16.msra.mxu0 %v74
    %100 = vmatprep.subr.bf16.mxu0 0
    %101 = vmatpush1.bf16.msra.mxu0 %v73
    %102 = vmatprep.subr.bf16.mxu0 0
    %103 = vmatpush1.bf16.msra.mxu0 %v72
    %104 = vmatprep.subr.bf16.mxu0 0
    %105 = vmatpush2.bf16.msra.mxu0 0
    %106 = vmatprep.subr.bf16.mxu0 0
    %107 = vmatpush2.bf16.msra.mxu0 0
    %108 = vmatprep.subr.bf16.mxu0 0
    %109 = vmatpush2.bf16.msra.mxu0 0
    %110 = vmatprep.subr.bf16.mxu0 0
    %111 = vmatpush2.bf16.msra.mxu0 0
    %112 = vmatprep.subr.bf16.mxu0 0
    %113 = vmatpush2.bf16.msra.mxu0 0
    %114 = vmatprep.subr.bf16.mxu0 0
    %115 = vmatpush2.bf16.msra.mxu0 0
    %116 = vmatprep.subr.bf16.mxu0 0
    %117 = vmatpush2.bf16.msra.mxu0 0
    %118 = vmatprep.subr.bf16.mxu0 0
    %119 = vmatpush2.bf16.msra.mxu0 0
    %120 = vmatprep.mubr.bf16.mxu0 0
    %121 = vmatmul.mubr.bf16.gmra.mxu0 %v39
    %v122 = vpop.f32.mrf.mxu0
    %v123 = vadd.f32 0.0, %v122
    %v124 = vpop.f32.mrf.mxu0
    %v125 = vpop.f32.mrf.mxu0
    %v126 = vpop.f32.mrf.mxu0
    %127 = vdwg.mxu0
    %128 = vmatprep.subr.bf16.mxu0 0
    %129 = vmatpush1.bf16.msra.mxu0 %v79
    %130 = vmatprep.subr.bf16.mxu0 0
    %131 = vmatpush1.bf16.msra.mxu0 %v78
    %132 = vmatprep.subr.bf16.mxu0 0
    %133 = vmatpush1.bf16.msra.mxu0 %v77
    %134 = vmatprep.subr.bf16.mxu0 0
    %135 = vmatpush1.bf16.msra.mxu0 %v76
    %136 = vmatprep.subr.bf16.mxu0 0
    %137 = vmatpush1.bf16.msra.mxu0 %v75
    %138 = vmatprep.subr.bf16.mxu0 0
    %139 = vmatpush1.bf16.msra.mxu0 %v74
    %140 = vmatprep.subr.bf16.mxu0 0
    %141 = vmatpush1.bf16.msra.mxu0 %v73
    %142 = vmatprep.subr.bf16.mxu0 0
    %143 = vmatpush1.bf16.msra.mxu0 %v72
    %144 = vmatprep.subr.bf16.mxu0 0
    %145 = vmatpush2.bf16.msra.mxu0 0
    %146 = vmatprep.subr.bf16.mxu0 0
    %147 = vmatpush2.bf16.msra.mxu0 0
    %148 = vmatprep.subr.bf16.mxu0 0
    %149 = vmatpush2.bf16.msra.mxu0 0
    %150 = vmatprep.subr.bf16.mxu0 0
    %151 = vmatpush2.bf16.msra.mxu0 0
    %152 = vmatprep.subr.bf16.mxu0 0
    %153 = vmatpush2.bf16.msra.mxu0 0
    %154 = vmatprep.subr.bf16.mxu0 0
    %155 = vmatpush2.bf16.msra.mxu0 0
    %156 = vmatprep.subr.bf16.mxu0 0
    %157 = vmatpush2.bf16.msra.mxu0 0
    %158 = vmatprep.subr.bf16.mxu0 0
    %159 = vmatpush2.bf16.msra.mxu0 0
    %160 = vmatprep.mubr.bf16.mxu0 0
    %161 = vmatmul.mubr.bf16.gmra.mxu0 %v36
    %v162 = vpop.f32.mrf.mxu0
    %v163 = vadd.f32 %v123, %v162
    %v164 = vpop.f32.mrf.mxu0
    %v165 = vpop.f32.mrf.mxu0
    %v166 = vpop.f32.mrf.mxu0
    %167 = vdwg.mxu0
    %v168 = vpack.c.bf16 %v35, %v35
    %v169 = vunpack.c.l.bf16 %v168
    %v170 = vsub.f32 %v35, %v169
    %v171 = vpack.c.bf16 %v170, %v170
    %172 = vmatprep.subr.bf16.mxu0 0
    %173 = vmatpush1.bf16.msra.mxu0 %v79
    %174 = vmatprep.subr.bf16.mxu0 0
    %175 = vmatpush1.bf16.msra.mxu0 %v78
    %176 = vmatprep.subr.bf16.mxu0 0
    %177 = vmatpush1.bf16.msra.mxu0 %v77
    %178 = vmatprep.subr.bf16.mxu0 0
    %179 = vmatpush1.bf16.msra.mxu0 %v76
    %180 = vmatprep.subr.bf16.mxu0 0
    %181 = vmatpush1.bf16.msra.mxu0 %v75
    %182 = vmatprep.subr.bf16.mxu0 0
    %183 = vmatpush1.bf16.msra.mxu0 %v74
    %184 = vmatprep.subr.bf16.mxu0 0
    %185 = vmatpush1.bf16.msra.mxu0 %v73
    %186 = vmatprep.subr.bf16.mxu0 0
    %187 = vmatpush1.bf16.msra.mxu0 %v72
    %188 = vmatprep.subr.bf16.mxu0 0
    %189 = vmatpush2.bf16.msra.mxu0 0
    %190 = vmatprep.subr.bf16.mxu0 0
    %191 = vmatpush2.bf16.msra.mxu0 0
    %192 = vmatprep.subr.bf16.mxu0 0
    %193 = vmatpush2.bf16.msra.mxu0 0
    %194 = vmatprep.subr.bf16.mxu0 0
    %195 = vmatpush2.bf16.msra.mxu0 0
    %196 = vmatprep.subr.bf16.mxu0 0
    %197 = vmatpush2.bf16.msra.mxu0 0
    %198 = vmatprep.subr.bf16.mxu0 0
    %199 = vmatpush2.bf16.msra.mxu0 0
    %200 = vmatprep.subr.bf16.mxu0 0
    %201 = vmatpush2.bf16.msra.mxu0 0
    %202 = vmatprep.subr.bf16.mxu0 0
    %203 = vmatpush2.bf16.msra.mxu0 0
    %204 = vmatprep.mubr.bf16.mxu0 0
    %205 = vmatmul.mubr.bf16.gmra.mxu0 %v171
    %v206 = vpop.f32.mrf.mxu0
    %v207 = vadd.f32 0.0, %v206
    %v208 = vpop.f32.mrf.mxu0
    %v209 = vpop.f32.mrf.mxu0
    %v210 = vpop.f32.mrf.mxu0
    %211 = vdwg.mxu0
    %212 = vmatprep.subr.bf16.mxu0 0
    %213 = vmatpush1.bf16.msra.mxu0 %v79
    %214 = vmatprep.subr.bf16.mxu0 0
    %215 = vmatpush1.bf16.msra.mxu0 %v78
    %216 = vmatprep.subr.bf16.mxu0 0
    %217 = vmatpush1.bf16.msra.mxu0 %v77
    %218 = vmatprep.subr.bf16.mxu0 0
    %219 = vmatpush1.bf16.msra.mxu0 %v76
    %220 = vmatprep.subr.bf16.mxu0 0
    %221 = vmatpush1.bf16.msra.mxu0 %v75
    %222 = vmatprep.subr.bf16.mxu0 0
    %223 = vmatpush1.bf16.msra.mxu0 %v74
    %224 = vmatprep.subr.bf16.mxu0 0
    %225 = vmatpush1.bf16.msra.mxu0 %v73
    %226 = vmatprep.subr.bf16.mxu0 0
    %227 = vmatpush1.bf16.msra.mxu0 %v72
    %228 = vmatprep.subr.bf16.mxu0 0
    %229 = vmatpush2.bf16.msra.mxu0 0
    %230 = vmatprep.subr.bf16.mxu0 0
    %231 = vmatpush2.bf16.msra.mxu0 0
    %232 = vmatprep.subr.bf16.mxu0 0
    %233 = vmatpush2.bf16.msra.mxu0 0
    %234 = vmatprep.subr.bf16.mxu0 0
    %235 = vmatpush2.bf16.msra.mxu0 0
    %236 = vmatprep.subr.bf16.mxu0 0
    %237 = vmatpush2.bf16.msra.mxu0 0
    %238 = vmatprep.subr.bf16.mxu0 0
    %239 = vmatpush2.bf16.msra.mxu0 0
    %240 = vmatprep.subr.bf16.mxu0 0
    %241 = vmatpush2.bf16.msra.mxu0 0
    %242 = vmatprep.subr.bf16.mxu0 0
    %243 = vmatpush2.bf16.msra.mxu0 0
    %244 = vmatprep.mubr.bf16.mxu0 0
    %245 = vmatmul.mubr.bf16.gmra.mxu0 %v168
    %v246 = vpop.f32.mrf.mxu0
    %v247 = vadd.f32 %v207, %v246
    %v248 = vpop.f32.mrf.mxu0
    %v249 = vpop.f32.mrf.mxu0
    %v250 = vpop.f32.mrf.mxu0
    %251 = vdwg.mxu0
    %v252 = vmul.f32 %v163, %v163
    %v253 = vmul.f32 %v252, 0.0625
    %v254 = vsub.f32 %v247, %v253
    %v255 = vmul.f32 %v254, 0.06666667
    %v256 = vmax.f32 %v255, 0.0
    %v257 = vmax.f32 %v256, 1e-06
    %v258 = vmin.f32 %v257, 1000000.0
    %v259 = vlog2.pop %v258
    %v260 = vmul.f32 %v259, 0.6931472
    %vm261 = vcmask 64512
    %262 = vst.msk [vmem:[#allocation2] sm:$0xff] %vm261, %v260
    // Predicated region
    $region10: #{tpu_custom_call.1} parent=1 // pred_check
      _
    $region11: #{tpu_custom_call.1} parent=1 // pred_check_branch
      %264 = sbr.rel (0) target = $region13
    $region12: #{tpu_custom_call.1} parent=1 // pred_region
      %s266 = ssub.s32 128, 128
      %267 = vsyncadd [#allocation3], %s266
      %s269 = sshll.u32 [#allocation2], 4
      %s270 = int_to_ptr.vmem [resolvable:$true] %s269
      %272 = dma.vmem_to_hbm [thread:$0]  %s270, 128, %s2, [#allocation3]
    $region13: #{tpu_custom_call.1} parent=1 // pred_fallthru
      _
    // Predicated region
    $region14: #{tpu_custom_call.1} parent=1 // pred_check
      _
    $region15: #{tpu_custom_call.1} parent=1 // pred_check_branch
      %274 = sbr.rel (0) target = $region17
    $region16: #{tpu_custom_call.1} parent=1 // pred_region
      %275 = dma.done [#allocation3], 128
    $region17: #{tpu_custom_call.1} parent=1 // pred_fallthru
      _
    %276 = vsyncpa [#allocation3], 1

</llo_original>
